<compile_context>
chip_gen: v7x
topology: tpu7x:2x2x1
jax: 0.10.0
libtpu: 0.0.40
codegen_flags: <defaults>
</compile_context>

<pallas_src>
import jax
import jax.numpy as jnp
from jax.experimental import pallas as pl
from jax.experimental.pallas import tpu as pltpu

_LANE = 128
_VMEM_TILE_BUDGET = 40 * 2**20   # tile-selection budget (headroom under v7x's 64 MiB physical)
_VMEM_LIMIT_MIN = 32 * 2**20     # raise v5e's 16 MiB default scoped VMEM
_VMEM_LIMIT_CAP = 60 * 2**20     # stay below v7x's 64 MiB physical ceiling


def _round_up(x: int, m: int) -> int:
    return (x + m - 1) // m * m


def _pow2_floor(n: int) -> int:
    return 1 << (n.bit_length() - 1) if n >= 1 else 1


def _vmem_limit(footprint_bytes: int) -> int:
    return int(min(_VMEM_LIMIT_CAP, max(2 * footprint_bytes, _VMEM_LIMIT_MIN)))


# ---------------------------------------------------------------------------
# Flash-style tiled path: grid = (q_tiles, k_tiles), O(seq^2 * dim) flops.
# ---------------------------------------------------------------------------
def _flash_kernel(xq_ref, xk_ref, o_ref, acc_ref, colsum_ref):
    k = pl.program_id(1)

    @pl.when(k == 0)
    def _init():
        acc_ref[...] = jnp.zeros_like(acc_ref)
        colsum_ref[...] = jnp.zeros_like(colsum_ref)

    xq = xq_ref[...]                      # [tq, dim_pad] (compute dtype)
    xk = xk_ref[...]                      # [tk, dim_pad]

    # Score tile [tq, tk]: contract the last dims of both operands directly,
    # so no transpose (XLU vxpose / extra VMEM copy) is emitted.
    s = jax.lax.dot_general(
        xq, xk,
        dimension_numbers=(((1,), (1,)), ((), ())),
        preferred_element_type=jnp.float32,
    )

    # Running key column-sum: the per-query denominator sum_i <xq_j, xk_i> is
    # computed once in finalize as xq @ colsum^T, removing the per-step
    # tq*tk cross-lane reduce and a full re-read of the staged score tile.
    colsum_ref[...] += jnp.sum(xk.astype(jnp.float32), axis=0, keepdims=True)

    # Un-normalized output accumulation: acc += S_tile @ x_tile.
    # bf16 inputs feed the MXU bf16 operands; f32 inputs stay exact f32.
    s_lhs = s if xk.dtype == jnp.float32 else s.astype(xk.dtype)
    acc_ref[...] += jnp.dot(s_lhs, xk, preferred_element_type=jnp.float32)

    @pl.when(k == pl.num_programs(1) - 1)
    def _finalize():
        rsum = jax.lax.dot_general(
            xq.astype(jnp.float32), colsum_ref[...],
            dimension_numbers=(((1,), (1,)), ((), ())),
            preferred_element_type=jnp.float32,
        )                                                    # [tq, 1]
        # Zero-guard: padded (all-zero) query rows have rsum == 0 — keep them
        # 0 instead of 0 * inf = NaN; they are sliced off by the wrapper.
        # (A genuinely zero row-sum is degenerate in the reference too.)
        safe = jnp.where(rsum == 0.0, 1.0, rsum)
        o_ref[...] = (acc_ref[...] * pl.reciprocal(safe, approx=False)).astype(o_ref.dtype)


def _flash_footprint(tq, tk, dim_pad, in_bytes, out_bytes):
    inputs = 2 * (tq + tk) * dim_pad * in_bytes              # double-buffered q/k blocks
    outputs = 2 * tq * dim_pad * out_bytes                   # double-buffered output block
    acc = tq * dim_pad * 4                                   # f32 accumulator scratch
    colsum = 8 * dim_pad * 4                                 # colsum scratch (sublane-padded)
    score = tq * tk * 4 + (tq * tk * in_bytes if in_bytes < 4 else 0)  # staged scores (+cast)
    return inputs + outputs + acc + colsum + score


def _self_attention_flash(x, out_dtype, q_tile, k_tile):
    seq, dim = x.shape
    in_bytes = jnp.dtype(x.dtype).itemsize
    out_bytes = jnp.dtype(out_dtype).itemsize
    dim_pad = _round_up(dim, _LANE)                          # lane-dense feature axis

    tq_target = q_tile if q_tile is not None else (1024 if dim_pad <= 256 else 512)
    tk_target = k_tile if k_tile is not None else 512

    n_rows = pl.cdiv(seq, _LANE)                             # 128-row units in the sequence
    tq_units = _pow2_floor(max(1, min(tq_target // _LANE, n_rows)))
    tk_units = _pow2_floor(max(1, min(tk_target // _LANE, n_rows)))

    # v7x megacore: prefer >= 2 query tiles when the sequence allows it.
    if n_rows >= 2 and tq_units * _LANE >= _round_up(seq, _LANE):
        tq_units = max(1, tq_units // 2)

    # Shrink tiles (key tile first) until the pipeline fits the VMEM budget.
    def fp(tqu, tku):
        return _flash_footprint(tqu * _LANE, tku * _LANE, dim_pad, in_bytes, out_bytes)

    while fp(tq_units, tk_units) > _VMEM_TILE_BUDGET and tk_units > 1:
        tk_units //= 2
    while fp(tq_units, tk_units) > _VMEM_TILE_BUDGET and tq_units > 1:
        tq_units //= 2

    tq, tk = tq_units * _LANE, tk_units * _LANE
    seq_pad = _round_up(seq, max(tq, tk))   # tiles are pow2*128 -> max is a common multiple

    if (seq_pad, dim_pad) != (seq, dim):
        x = jnp.pad(x, ((0, seq_pad - seq), (0, dim_pad - dim)))

    out = pl.pallas_call(
        _flash_kernel,
        out_shape=jax.ShapeDtypeStruct((seq_pad, dim_pad), out_dtype),
        grid=(seq_pad // tq, seq_pad // tk),                 # reduction (key) axis last
        in_specs=[
            pl.BlockSpec((tq, dim_pad), lambda qi, ki: (qi, 0)),   # query rows
            pl.BlockSpec((tk, dim_pad), lambda qi, ki: (ki, 0)),   # key rows
        ],
        out_specs=pl.BlockSpec((tq, dim_pad), lambda qi, ki: (qi, 0)),
        scratch_shapes=[
            pltpu.VMEM((tq, dim_pad), jnp.float32),          # un-normalized output accumulator
            pltpu.VMEM((1, dim_pad), jnp.float32),           # running key column-sum
        ],
        compiler_params=pltpu.CompilerParams(
            dimension_semantics=("parallel", "arbitrary"),
            vmem_limit_bytes=_vmem_limit(fp(tq_units, tk_units)),
        ),
    )(x, x)
    return out[:seq, :dim]


# ---------------------------------------------------------------------------
# Algebraic fast path for dim << seq:
#   G = x^T @ x (dim x dim), colsum = sum_i x_i
#   out = (x @ G) / (x @ colsum^T)    — O(seq*dim^2) flops, O(seq*dim) HBM.
# ---------------------------------------------------------------------------
def _gram_kernel(x_ref, g_ref, c_ref):
    @pl.when(pl.program_id(0) == 0)
    def _init():
        g_ref[...] = jnp.zeros_like(g_ref)
        c_ref[...] = jnp.zeros_like(c_ref)

    x = x_ref[...]                                           # [ts, dim_pad]
    # Accumulate directly into the resident f32 output blocks (no extra scratch).
    g_ref[...] += jax.lax.dot_general(
        x, x, dimension_numbers=(((0,), (0,)), ((), ())),
        preferred_element_type=jnp.float32)
    c_ref[...] += jnp.sum(x.astype(jnp.float32), axis=0, keepdims=True)


def _apply_kernel(x_ref, g_ref, c_ref, o_ref):
    x = x_ref[...].astype(jnp.float32)                       # [ts, dim_pad]
    num = jnp.dot(x, g_ref[...], preferred_element_type=jnp.float32)
    rsum = jax.lax.dot_general(
        x, c_ref[...], dimension_numbers=(((1,), (1,)), ((), ())),
        preferred_element_type=jnp.float32)                  # [ts, 1]
    safe = jnp.where(rsum == 0.0, 1.0, rsum)                 # padded rows -> 0, not NaN
    o_ref[...] = (num * pl.reciprocal(safe, approx=False)).astype(o_ref.dtype)


def _self_attention_fast(x, out_dtype):
    seq, dim = x.shape
    in_bytes = jnp.dtype(x.dtype).itemsize
    out_bytes = jnp.dtype(out_dtype).itemsize
    dim_pad = _round_up(dim, _LANE)

    ts = _pow2_floor(max(1, min(1024 // _LANE, pl.cdiv(seq, _LANE)))) * _LANE
    seq_pad = _round_up(seq, ts)

    if (seq_pad, dim_pad) != (seq, dim):
        x = jnp.pad(x, ((0, seq_pad - seq), (0, dim_pad - dim)))

    footprint = (2 * ts * dim_pad * (in_bytes + out_bytes)
                 + 2 * dim_pad * dim_pad * 4
                 + 2 * 8 * dim_pad * 4
                 + ts * dim_pad * 4)
    grid = (seq_pad // ts,)

    gram, colsum = pl.pallas_call(
        _gram_kernel,
        out_shape=(jax.ShapeDtypeStruct((dim_pad, dim_pad), jnp.float32),
                   jax.ShapeDtypeStruct((1, dim_pad), jnp.float32)),
        grid=grid,
        in_specs=[pl.BlockSpec((ts, dim_pad), lambda i: (i, 0))],
        out_specs=[pl.BlockSpec((dim_pad, dim_pad), lambda i: (0, 0)),
                   pl.BlockSpec((1, dim_pad), lambda i: (0, 0))],
        compiler_params=pltpu.CompilerParams(
            dimension_semantics=("arbitrary",),
            vmem_limit_bytes=_vmem_limit(footprint),
        ),
    )(x)

    out = pl.pallas_call(
        _apply_kernel,
        out_shape=jax.ShapeDtypeStruct((seq_pad, dim_pad), out_dtype),
        grid=grid,
        in_specs=[pl.BlockSpec((ts, dim_pad), lambda i: (i, 0)),
                  pl.BlockSpec((dim_pad, dim_pad), lambda i: (0, 0)),
                  pl.BlockSpec((1, dim_pad), lambda i: (0, 0))],
        out_specs=pl.BlockSpec((ts, dim_pad), lambda i: (i, 0)),
        compiler_params=pltpu.CompilerParams(
            dimension_semantics=("parallel",),
            vmem_limit_bytes=_vmem_limit(footprint),
        ),
    )(x, gram, colsum)
    return out[:seq, :dim]


# ---------------------------------------------------------------------------
# Public wrapper
# ---------------------------------------------------------------------------
def self_attention(sentence: jax.Array, *, q_tile: int | None = None,
                   k_tile: int | None = None, compute_dtype=None,
                   fast_path: bool | None = None) -> jax.Array:
    """Pallas TPU forward pass of the no-weight SelfAttention module.

    sentence: [seq, dim] token embeddings; returns [seq, dim].
    compute_dtype: opt-in reduced-precision MXU operands (e.g. jnp.bfloat16)
      for f32 inputs; output keeps the input dtype.
    fast_path: force/disable the O(seq*dim^2) algebraic path (auto when None).
    """
    seq, dim = sentence.shape
    out_dtype = sentence.dtype
    x = sentence if compute_dtype is None else sentence.astype(compute_dtype)

    dim_pad = _round_up(dim, _LANE)
    if fast_path is None:
        fast_path = (dim_pad <= 512) and (seq >= 8 * dim_pad)

    if fast_path:
        return _self_attention_fast(x, out_dtype)
    return _self_attention_flash(x, out_dtype, q_tile, k_tile)


def _reference(sentence: jnp.ndarray) -> jnp.ndarray:
    # Pure-JAX reference matching the PyTorch loops exactly.
    scores = sentence @ sentence.T
    weights = scores / jnp.sum(scores, axis=-1, keepdims=True)
    return weights @ sentence


if __name__ == "__main__":
    key = jax.random.PRNGKey(0)
    k1, k2, k3 = jax.random.split(key, 3)
    dim = 32

    # 1) Module-implied shape: one sentence of 8 token embeddings, hidden 32.
    #    (+1.0 keeps the non-softmax row sums well away from zero.)
    s1 = jax.random.normal(k1, (8, dim), dtype=jnp.float32) * 0.1 + 1.0
    o1 = self_attention(s1)
    jax.block_until_ready(o1)
    r1 = _reference(s1)
    assert o1.shape == s1.shape
    assert jnp.allclose(o1, r1, atol=1e-4, rtol=1e-4), "mismatch (8x32, flash path)"

    # 2) Multi-tile flash path: 3x3 grid, key-axis accumulation, padded rows
    #    exercising the zero-guard and init/finalize pl.when blocks.
    s2 = jax.random.normal(k2, (300, dim), dtype=jnp.float32) * 0.1 + 1.0
    o2 = self_attention(s2, q_tile=128, k_tile=128, fast_path=False)
    jax.block_until_ready(o2)
    r2 = _reference(s2)
    assert o2.shape == s2.shape
    assert jnp.allclose(o2, r2, atol=1e-4, rtol=1e-4), "mismatch (300x32, flash path)"

    # 3) Algebraic O(seq*dim^2) fast path (auto-dispatched for dim << seq).
    s3 = jax.random.normal(k3, (2048, dim), dtype=jnp.float32) * 0.1 + 1.0
    o3 = self_attention(s3)
    jax.block_until_ready(o3)
    r3 = _reference(s3)
    assert o3.shape == s3.shape
    assert jnp.allclose(o3, r3, atol=1e-4, rtol=1e-3), "mismatch (2048x32, fast path)"

    # 4) Opt-in bf16 compute mode (f32 in/out, bf16 MXU operands).
    o4 = self_attention(s2, fast_path=False, compute_dtype=jnp.bfloat16)
    jax.block_until_ready(o4)
    assert o4.dtype == s2.dtype and o4.shape == s2.shape
    assert jnp.allclose(o4, r2, atol=5e-2, rtol=5e-2), "mismatch (bf16 compute mode)"

    print("KERNEL_OK")
</pallas_src>

<mosaic_0001>
module attributes {stable_mosaic.version = 11 : i64} {
  func.func @_flash_kernel(%arg0: i32, %arg1: i32, %arg2: memref<128x128xf32, #tpu.memory_space<vmem>>, %arg3: memref<128x128xf32, #tpu.memory_space<vmem>>, %arg4: memref<128x128xf32, #tpu.memory_space<vmem>>, %arg5: memref<128x128xf32, #tpu.memory_space<vmem>>, %arg6: memref<1x128xf32, #tpu.memory_space<vmem>>) attributes {dimension_semantics = [#tpu.dimension_semantics<parallel>, #tpu.dimension_semantics<arbitrary>], iteration_bounds = array<i64: 1, 1>, scalar_prefetch = 0 : i64, scratch_operands = 2 : i64, tpu.core_type = #tpu.core_type<tc>, window_params = [{transform_indices = @transform_0, window_bounds = array<i64: 128, 128>}, {transform_indices = @transform_1, window_bounds = array<i64: 128, 128>}, {transform_indices = @transform_2, window_bounds = array<i64: 128, 128>}]} {
    %c0_i32 = arith.constant 0 : i32
    %0 = arith.cmpi eq, %arg1, %c0_i32 : i32
    %1 = arith.extui %0 : i1 to i32
    %c0_i32_0 = arith.constant 0 : i32
    %2 = arith.cmpi ne, %1, %c0_i32_0 : i32
    scf.if %2 {
      %cst_16 = arith.constant 0.000000e+00 : f32
      %18 = vector.broadcast %cst_16 : f32 to vector<128x128xf32>
      %c0_17 = arith.constant 0 : index
      %c0_18 = arith.constant 0 : index
      %19 = vector.load %arg5[%c0_17, %c0_18] : memref<128x128xf32, #tpu.memory_space<vmem>>, vector<128x128xf32>
      tpu.vector_store %arg5[%c0_17, %c0_18], %18 {strides = array<i32>} : memref<128x128xf32, #tpu.memory_space<vmem>>, vector<128x128xf32>,
      %cst_19 = arith.constant 0.000000e+00 : f32
      %20 = vector.broadcast %cst_19 : f32 to vector<1x128xf32>
      %c0_20 = arith.constant 0 : index
      %c0_21 = arith.constant 0 : index
      %21 = vector.load %arg6[%c0_20, %c0_21] : memref<1x128xf32, #tpu.memory_space<vmem>>, vector<1x128xf32>
      tpu.vector_store %arg6[%c0_20, %c0_21], %20 {strides = array<i32>} : memref<1x128xf32, #tpu.memory_space<vmem>>, vector<1x128xf32>,
    } else {
    }
    %c0 = arith.constant 0 : index
    %c0_1 = arith.constant 0 : index
    %3 = vector.load %arg2[%c0, %c0_1] : memref<128x128xf32, #tpu.memory_space<vmem>>, vector<128x128xf32>
    %c0_2 = arith.constant 0 : index
    %c0_3 = arith.constant 0 : index
    %4 = vector.load %arg3[%c0_2, %c0_3] : memref<128x128xf32, #tpu.memory_space<vmem>>, vector<128x128xf32>
    %cst = arith.constant dense<0.000000e+00> : vector<128x128xf32>
    %5 = tpu.matmul %3, %4, %cst {dimension_numbers = #tpu.dot_dimension_numbers<[1], [1], [0], [0], [0, 0, 1, 0], [], []>} : vector<128x128xf32>, vector<128x128xf32>, vector<128x128xf32> -> vector<128x128xf32>
    %c0_4 = arith.constant 0 : index
    %c0_5 = arith.constant 0 : index
    %6 = vector.load %arg6[%c0_4, %c0_5] : memref<1x128xf32, #tpu.memory_space<vmem>>, vector<1x128xf32>
    %cst_6 = arith.constant dense<0.000000e+00> : vector<128xf32>
    %7 = vector.multi_reduction <add>, %4, %cst_6 [0] : vector<128x128xf32> to vector<128xf32>
    %8 = vector.shape_cast %7 : vector<128xf32> to vector<1x128xf32>
    %9 = arith.addf %6, %8 : vector<1x128xf32>
    %c0_7 = arith.constant 0 : index
    %c0_8 = arith.constant 0 : index
    %10 = vector.load %arg6[%c0_7, %c0_8] : memref<1x128xf32, #tpu.memory_space<vmem>>, vector<1x128xf32>
    tpu.vector_store %arg6[%c0_7, %c0_8], %9 {strides = array<i32>} : memref<1x128xf32, #tpu.memory_space<vmem>>, vector<1x128xf32>,
    %c0_9 = arith.constant 0 : index
    %c0_10 = arith.constant 0 : index
    %11 = vector.load %arg5[%c0_9, %c0_10] : memref<128x128xf32, #tpu.memory_space<vmem>>, vector<128x128xf32>
    %cst_11 = arith.constant dense<0.000000e+00> : vector<128x128xf32>
    %12 = tpu.matmul %5, %4, %cst_11 {dimension_numbers = #tpu.dot_dimension_numbers<[1], [0], [0], [1], [0, 0, 1, 1], [], []>} : vector<128x128xf32>, vector<128x128xf32>, vector<128x128xf32> -> vector<128x128xf32>
    %13 = arith.addf %11, %12 : vector<128x128xf32>
    %c0_12 = arith.constant 0 : index
    %c0_13 = arith.constant 0 : index
    %14 = vector.load %arg5[%c0_12, %c0_13] : memref<128x128xf32, #tpu.memory_space<vmem>>, vector<128x128xf32>
    tpu.vector_store %arg5[%c0_12, %c0_13], %13 {strides = array<i32>} : memref<128x128xf32, #tpu.memory_space<vmem>>, vector<128x128xf32>,
    %c0_i32_14 = arith.constant 0 : i32
    %15 = arith.cmpi eq, %arg1, %c0_i32_14 : i32
    %16 = arith.extui %15 : i1 to i32
    %c0_i32_15 = arith.constant 0 : i32
    %17 = arith.cmpi ne, %16, %c0_i32_15 : i32
    scf.if %17 {
      %c0_16 = arith.constant 0 : index
      %c0_17 = arith.constant 0 : index
      %18 = vector.load %arg6[%c0_16, %c0_17] : memref<1x128xf32, #tpu.memory_space<vmem>>, vector<1x128xf32>
      %cst_18 = arith.constant dense<0.000000e+00> : vector<128x1xf32>
      %19 = tpu.matmul %3, %18, %cst_18 {dimension_numbers = #tpu.dot_dimension_numbers<[1], [1], [0], [0], [0, 0, 1, 0], [], []>} : vector<128x128xf32>, vector<1x128xf32>, vector<128x1xf32> -> vector<128x1xf32>
      %cst_19 = arith.constant 0.000000e+00 : f32
      %20 = vector.broadcast %cst_19 : f32 to vector<128x1xf32>
      %21 = arith.cmpf oeq, %19, %20 : vector<128x1xf32>
      %cst_20 = arith.constant 1.000000e+00 : f32
      %22 = vector.broadcast %cst_20 : f32 to vector<128x1xf32>
      %23 = arith.select %21, %22, %19 : vector<128x1xi1>, vector<128x1xf32>
      %c0_21 = arith.constant 0 : index
      %c0_22 = arith.constant 0 : index
      %24 = vector.load %arg5[%c0_21, %c0_22] : memref<128x128xf32, #tpu.memory_space<vmem>>, vector<128x128xf32>
      %25 = tpu.reciprocal %23 : vector<128x1xf32> -> vector<128x1xf32>
      %26 = vector.broadcast %25 : vector<128x1xf32> to vector<128x128xf32>
      %27 = arith.mulf %24, %26 : vector<128x128xf32>
      %c0_23 = arith.constant 0 : index
      %c0_24 = arith.constant 0 : index
      %28 = vector.load %arg4[%c0_23, %c0_24] : memref<128x128xf32, #tpu.memory_space<vmem>>, vector<128x128xf32>
      tpu.vector_store %arg4[%c0_23, %c0_24], %27 {strides = array<i32>} : memref<128x128xf32, #tpu.memory_space<vmem>>, vector<128x128xf32>,
    } else {
    }
    return
  }
  func.func @transform_0(%arg0: i32, %arg1: i32) -> (i32, i32) {
    %c0_i32 = arith.constant 0 : i32
    %c0_i32_0 = arith.constant 0 : i32
    return %arg0, %c0_i32 : i32, i32
  }
  func.func @transform_1(%arg0: i32, %arg1: i32) -> (i32, i32) {
    %c0_i32 = arith.constant 0 : i32
    %c0_i32_0 = arith.constant 0 : i32
    return %arg1, %c0_i32 : i32, i32
  }
  func.func @transform_2(%arg0: i32, %arg1: i32) -> (i32, i32) {
    %c0_i32 = arith.constant 0 : i32
    %c0_i32_0 = arith.constant 0 : i32
    return %arg0, %c0_i32 : i32, i32
  }
}

</mosaic_0001>

<llo_original>
// kernel: tpu_custom_call.1
$region0: #{tpu_custom_call.1}
  #allocation0 [shape = 'u32[]', space=smem, size = 0x4, offset = 0x4, fixed_abs, tag = 'smem constant byte address 0x4 - core index']
  #allocation1 [shape = 'u32[144,128]{1,0:T(1,128)}', space=vmem, size = 0x12000, scoped, tag = 'internal scratch']
  #allocation2 [shape = 'f32[128,128]{1,0:T(8,128)}', space=vmem, size = 0x10000, scoped, tag = 'scratch operand']
  #allocation3 [shape = 'f32[1,128]{1,0:T(1,128)}', space=vmem, size = 0x200, scoped, tag = 'scratch operand']
  %s0 = inlined_call_operand.hbm [shape: f32[128,128], index: 0, kind: input, shape index: {}]
  %s1 = inlined_call_operand.hbm [shape: f32[128,128], index: 1, kind: input, shape index: {}]
  %s2 = inlined_call_operand.hbm [shape: f32[128,128], index: 2, kind: output, shape index: {}]
  %s3 = sld [smem:[#allocation0]]
  $region34: #{tpu_custom_call.1} parent=0
    _
  %s5 = ssub.s32 1, %s3
  %s6 = scalar_select 0, %s5, %s3
  $region1: #{tpu_custom_call.1} parent=0
    #allocation4 [shape = 'u8[65536]{0}', space=vmem, size = 0x10000, scoped, tag = 'input window, operand 0, single buffered']
    #allocation5 [shape = 's32[1]{0}', space=sflag, size = 0x4, scoped, tag = 'scoped memory for tpu_custom_call.1']
    #allocation6 [shape = 's32[1]{0}', space=sflag, size = 0x4, scoped, tag = 'scoped memory for tpu_custom_call.1']
    #allocation7 [shape = 'u8[65536]{0}', space=vmem, size = 0x10000, scoped, tag = 'input window, operand 1, single buffered']
    #allocation8 [shape = 's32[1]{0}', space=sflag, size = 0x4, scoped, tag = 'scoped memory for tpu_custom_call.1']
    #allocation9 [shape = 'u8[65536]{0}', space=vmem, size = 0x10000, scoped, tag = 'output window, operand 0, single buffered']
    %7 = vsyncpa [#allocation5], 0
    %8 = vsyncpa [#allocation8], 0
    %9 = vsyncpa [#allocation6], 0
    // Predicated region
    $region2: #{tpu_custom_call.1} parent=1 // pred_check
      _
    $region3: #{tpu_custom_call.1} parent=1 // pred_check_branch
      %11 = sbr.rel (0) target = $region5
    $region4: #{tpu_custom_call.1} parent=1 // pred_region
      %s13 = ssub.s32 2048, 2048
      %14 = vsyncadd [#allocation5], %s13
      %s15 = sshll.u32 [#allocation4], 4
      %s16 = int_to_ptr.vmem [resolvable:$true] %s15
      %21 = dma.hbm_to_vmem [thread:$0]  %s0, 2048, %s16, [#allocation5], 128, 128, 8
    $region5: #{tpu_custom_call.1} parent=1 // pred_fallthru
      _
    // Predicated region
    $region6: #{tpu_custom_call.1} parent=1 // pred_check
      _
    $region7: #{tpu_custom_call.1} parent=1 // pred_check_branch
      %23 = sbr.rel (0) target = $region9
    $region8: #{tpu_custom_call.1} parent=1 // pred_region
      %s25 = ssub.s32 2048, 2048
      %26 = vsyncadd [#allocation8], %s25
      %s27 = sshll.u32 [#allocation7], 4
      %s28 = int_to_ptr.vmem [resolvable:$true] %s27
      %33 = dma.hbm_to_vmem [thread:$0]  %s1, 2048, %s28, [#allocation8], 128, 128, 8
    $region9: #{tpu_custom_call.1} parent=1 // pred_fallthru
      _
    // Predicated region
    $region10: #{tpu_custom_call.1} parent=1 // pred_check
      _
    $region11: #{tpu_custom_call.1} parent=1 // pred_check_branch
      %35 = sbr.rel (0) target = $region13
    $region12: #{tpu_custom_call.1} parent=1 // pred_region
      %36 = dma.done [#allocation5], 2048
    $region13: #{tpu_custom_call.1} parent=1 // pred_fallthru
      _
    // Predicated region
    $region14: #{tpu_custom_call.1} parent=1 // pred_check
      _
    $region15: #{tpu_custom_call.1} parent=1 // pred_check_branch
      %38 = sbr.rel (0) target = $region17
    $region16: #{tpu_custom_call.1} parent=1 // pred_region
      %39 = dma.done [#allocation8], 2048
    $region17: #{tpu_custom_call.1} parent=1 // pred_fallthru
      _
    %p40 = scmp.eq.s32.totalorder 0, 0
    // Predicated region
    $region18: #{tpu_custom_call.1} parent=1 // pred_check
      %p41 = pneg %p40
    $region19: #{tpu_custom_call.1} parent=1 // pred_check_branch
      %43 = sbr.rel (%p41) target = $region21
    $region20: #{tpu_custom_call.1} parent=1 // pred_region
      %44 = vst [vmem:[#allocation2] sm:$0xff] 0.0
      %45 = vst [vmem:[#allocation2 + $0x8] sm:$0xff] 0.0
      %46 = vst [vmem:[#allocation2 + $0x10] sm:$0xff] 0.0
      %47 = vst [vmem:[#allocation2 + $0x18] sm:$0xff] 0.0
      %48 = vst [vmem:[#allocation2 + $0x20] sm:$0xff] 0.0
      %49 = vst [vmem:[#allocation2 + $0x28] sm:$0xff] 0.0
      %50 = vst [vmem:[#allocation2 + $0x30] sm:$0xff] 0.0
      %51 = vst [vmem:[#allocation2 + $0x38] sm:$0xff] 0.0
      %52 = vst [vmem:[#allocation2 + $0x40] sm:$0xff] 0.0
      %53 = vst [vmem:[#allocation2 + $0x48] sm:$0xff] 0.0
      %54 = vst [vmem:[#allocation2 + $0x50] sm:$0xff] 0.0
      %55 = vst [vmem:[#allocation2 + $0x58] sm:$0xff] 0.0
      %56 = vst [vmem:[#allocation2 + $0x60] sm:$0xff] 0.0
      %57 = vst [vmem:[#allocation2 + $0x68] sm:$0xff] 0.0
      %58 = vst [vmem:[#allocation2 + $0x70] sm:$0xff] 0.0
      %59 = vst [vmem:[#allocation2 + $0x78] sm:$0xff] 0.0
      %60 = vst [vmem:[#allocation3] sm:$0x1] 0.0
    $region21: #{tpu_custom_call.1} parent=1 // pred_fallthru
      _
    %v61 = vld [vmem:[#allocation4] sm:$0xff]
    %v62 = vld [vmem:[#allocation4 + $0x8] sm:$0xff]
    %v63 = vld [vmem:[#allocation4 + $0x10] sm:$0xff]
    %v64 = vld [vmem:[#allocation4 + $0x18] sm:$0xff]
    %v65 = vld [vmem:[#allocation4 + $0x20] sm:$0xff]
    %v66 = vld [vmem:[#allocation4 + $0x28] sm:$0xff]
    %v67 = vld [vmem:[#allocation4 + $0x30] sm:$0xff]
    %v68 = vld [vmem:[#allocation4 + $0x38] sm:$0xff]
    %v69 = vld [vmem:[#allocation4 + $0x40] sm:$0xff]
    %v70 = vld [vmem:[#allocation4 + $0x48] sm:$0xff]
    %v71 = vld [vmem:[#allocation4 + $0x50] sm:$0xff]
    %v72 = vld [vmem:[#allocation4 + $0x58] sm:$0xff]
    %v73 = vld [vmem:[#allocation4 + $0x60] sm:$0xff]
    %v74 = vld [vmem:[#allocation4 + $0x68] sm:$0xff]
    %v75 = vld [vmem:[#allocation4 + $0x70] sm:$0xff]
    %v76 = vld [vmem:[#allocation4 + $0x78] sm:$0xff]
    %v77 = vld [vmem:[#allocation7] sm:$0xff]
    %v78 = vld [vmem:[#allocation7 + $0x8] sm:$0xff]
    %v79 = vld [vmem:[#allocation7 + $0x10] sm:$0xff]
    %v80 = vld [vmem:[#allocation7 + $0x18] sm:$0xff]
    %v81 = vld [vmem:[#allocation7 + $0x20] sm:$0xff]
    %v82 = vld [vmem:[#allocation7 + $0x28] sm:$0xff]
    %v83 = vld [vmem:[#allocation7 + $0x30] sm:$0xff]
    %v84 = vld [vmem:[#allocation7 + $0x38] sm:$0xff]
    %v85 = vld [vmem:[#allocation7 + $0x40] sm:$0xff]
    %v86 = vld [vmem:[#allocation7 + $0x48] sm:$0xff]
    %v87 = vld [vmem:[#allocation7 + $0x50] sm:$0xff]
    %v88 = vld [vmem:[#allocation7 + $0x58] sm:$0xff]
    %v89 = vld [vmem:[#allocation7 + $0x60] sm:$0xff]
    %v90 = vld [vmem:[#allocation7 + $0x68] sm:$0xff]
    %v91 = vld [vmem:[#allocation7 + $0x70] sm:$0xff]
    %v92 = vld [vmem:[#allocation7 + $0x78] sm:$0xff]
    %93 = vmatprep.subr.mxu0 0.0
    %94 = vmatpush1.xpose.msra.mxu0 %v77
    %95 = vmatprep.subr.mxu0 0.0
    %96 = vmatpush1.xpose.msra.mxu0 %v78
    %97 = vmatprep.subr.mxu0 0.0
    %98 = vmatpush1.xpose.msra.mxu0 %v79
    %99 = vmatprep.subr.mxu0 0.0
    %100 = vmatpush1.xpose.msra.mxu0 %v80
    %101 = vmatprep.subr.mxu0 0.0
    %102 = vmatpush1.xpose.msra.mxu0 %v81
    %103 = vmatprep.subr.mxu0 0.0
    %104 = vmatpush1.xpose.msra.mxu0 %v82
    %105 = vmatprep.subr.mxu0 0.0
    %106 = vmatpush1.xpose.msra.mxu0 %v83
    %107 = vmatprep.subr.mxu0 0.0
    %108 = vmatpush1.xpose.msra.mxu0 %v84
    %109 = vmatprep.subr.mxu0 0.0
    %110 = vmatpush1.xpose.msra.mxu0 %v85
    %111 = vmatprep.subr.mxu0 0.0
    %112 = vmatpush1.xpose.msra.mxu0 %v86
    %113 = vmatprep.subr.mxu0 0.0
    %114 = vmatpush1.xpose.msra.mxu0 %v87
    %115 = vmatprep.subr.mxu0 0.0
    %116 = vmatpush1.xpose.msra.mxu0 %v88
    %117 = vmatprep.subr.mxu0 0.0
    %118 = vmatpush1.xpose.msra.mxu0 %v89
    %119 = vmatprep.subr.mxu0 0.0
    %120 = vmatpush1.xpose.msra.mxu0 %v90
    %121 = vmatprep.subr.mxu0 0.0
    %122 = vmatpush1.xpose.msra.mxu0 %v91
    %123 = vmatprep.subr.mxu0 0.0
    %124 = vmatpush1.xpose.msra.mxu0 %v92
    %125 = vmatprep.subr.mxu0 0.0
    %126 = vmatpush1.xpose.msra.mxu0 0.0
    %127 = vmatprep.subr.mxu0 0.0
    %128 = vmatpush1.xpose.msra.mxu0 0.0
    %129 = vmatprep.subr.mxu0 0.0
    %130 = vmatpush1.xpose.msra.mxu0 0.0
    %131 = vmatprep.subr.mxu0 0.0
    %132 = vmatpush1.xpose.msra.mxu0 0.0
    %133 = vmatprep.subr.mxu0 0.0
    %134 = vmatpush1.xpose.msra.mxu0 0.0
    %135 = vmatprep.subr.mxu0 0.0
    %136 = vmatpush1.xpose.msra.mxu0 0.0
    %137 = vmatprep.subr.mxu0 0.0
    %138 = vmatpush1.xpose.msra.mxu0 0.0
    %139 = vmatprep.subr.mxu0 0.0
    %140 = vmatpush1.xpose.msra.mxu0 0.0
    %141 = vmatprep.subr.mxu0 0.0
    %142 = vmatpush1.xpose.msra.mxu0 0.0
    %143 = vmatprep.subr.mxu0 0.0
    %144 = vmatpush1.xpose.msra.mxu0 0.0
    %145 = vmatprep.subr.mxu0 0.0
    %146 = vmatpush1.xpose.msra.mxu0 0.0
    %147 = vmatprep.subr.mxu0 0.0
    %148 = vmatpush1.xpose.msra.mxu0 0.0
    %149 = vmatprep.subr.mxu0 0.0
    %150 = vmatpush1.xpose.msra.mxu0 0.0
    %151 = vmatprep.subr.mxu0 0.0
    %152 = vmatpush1.xpose.msra.mxu0 0.0
    %153 = vmatprep.subr.mxu0 0.0
    %154 = vmatpush1.xpose.msra.mxu0 0.0
    %155 = vmatprep.subr.mxu0 0.0
    %156 = vmatpush1.xpose.msra.mxu0 0.0
    %157 = vmatprep.mubr.f32.mxu0 0.0
    %158 = vmatmul.mubr.f32.gmra.mrb[0].mxu0 %v61
    %v159 = vpop.f32.mrb[0].mxu0
    %v160 = vadd.f32 0.0, %v159
    %v161 = vpop.f32.mrb[0].mxu0
    %162 = vmatprep.mubr.f32.mxu0 0.0
    %163 = vmatmul.mubr.f32.gmra.mrb[0].mxu0 %v62
    %v164 = vpop.f32.mrb[0].mxu0
    %v165 = vadd.f32 0.0, %v164
    %v166 = vpop.f32.mrb[0].mxu0
    %167 = vmatprep.mubr.f32.mxu0 0.0
    %168 = vmatmul.mubr.f32.gmra.mrb[0].mxu0 %v63
    %v169 = vpop.f32.mrb[0].mxu0
    %v170 = vadd.f32 0.0, %v169
    %v171 = vpop.f32.mrb[0].mxu0
    %172 = vmatprep.mubr.f32.mxu0 0.0
    %173 = vmatmul.mubr.f32.gmra.mrb[0].mxu0 %v64
    %v174 = vpop.f32.mrb[0].mxu0
    %v175 = vadd.f32 0.0, %v174
    %v176 = vpop.f32.mrb[0].mxu0
    %177 = vmatprep.mubr.f32.mxu0 0.0
    %178 = vmatmul.mubr.f32.gmra.mrb[0].mxu0 %v65
    %v179 = vpop.f32.mrb[0].mxu0
    %v180 = vadd.f32 0.0, %v179
    %v181 = vpop.f32.mrb[0].mxu0
    %182 = vmatprep.mubr.f32.mxu0 0.0
    %183 = vmatmul.mubr.f32.gmra.mrb[0].mxu0 %v66
    %v184 = vpop.f32.mrb[0].mxu0
    %v185 = vadd.f32 0.0, %v184
    %v186 = vpop.f32.mrb[0].mxu0
    %187 = vmatprep.mubr.f32.mxu0 0.0
    %188 = vmatmul.mubr.f32.gmra.mrb[0].mxu0 %v67
    %v189 = vpop.f32.mrb[0].mxu0
    %v190 = vadd.f32 0.0, %v189
    %v191 = vpop.f32.mrb[0].mxu0
    %192 = vmatprep.mubr.f32.mxu0 0.0
    %193 = vmatmul.mubr.f32.gmra.mrb[0].mxu0 %v68
    %v194 = vpop.f32.mrb[0].mxu0
    %v195 = vadd.f32 0.0, %v194
    %v196 = vpop.f32.mrb[0].mxu0
    %197 = vmatprep.mubr.f32.mxu0 0.0
    %198 = vmatmul.mubr.f32.gmra.mrb[0].mxu0 %v69
    %v199 = vpop.f32.mrb[0].mxu0
    %v200 = vadd.f32 0.0, %v199
    %v201 = vpop.f32.mrb[0].mxu0
    %202 = vmatprep.mubr.f32.mxu0 0.0
    %203 = vmatmul.mubr.f32.gmra.mrb[0].mxu0 %v70
    %v204 = vpop.f32.mrb[0].mxu0
    %v205 = vadd.f32 0.0, %v204
    %v206 = vpop.f32.mrb[0].mxu0
    %207 = vmatprep.mubr.f32.mxu0 0.0
    %208 = vmatmul.mubr.f32.gmra.mrb[0].mxu0 %v71
    %v209 = vpop.f32.mrb[0].mxu0
    %v210 = vadd.f32 0.0, %v209
    %v211 = vpop.f32.mrb[0].mxu0
    %212 = vmatprep.mubr.f32.mxu0 0.0
    %213 = vmatmul.mubr.f32.gmra.mrb[0].mxu0 %v72
    %v214 = vpop.f32.mrb[0].mxu0
    %v215 = vadd.f32 0.0, %v214
    %v216 = vpop.f32.mrb[0].mxu0
    %217 = vmatprep.mubr.f32.mxu0 0.0
    %218 = vmatmul.mubr.f32.gmra.mrb[0].mxu0 %v73
    %v219 = vpop.f32.mrb[0].mxu0
    %v220 = vadd.f32 0.0, %v219
    %v221 = vpop.f32.mrb[0].mxu0
    %222 = vmatprep.mubr.f32.mxu0 0.0
    %223 = vmatmul.mubr.f32.gmra.mrb[0].mxu0 %v74
    %v224 = vpop.f32.mrb[0].mxu0
    %v225 = vadd.f32 0.0, %v224
    %v226 = vpop.f32.mrb[0].mxu0
    %227 = vmatprep.mubr.f32.mxu0 0.0
    %228 = vmatmul.mubr.f32.gmra.mrb[0].mxu0 %v75
    %v229 = vpop.f32.mrb[0].mxu0
    %v230 = vadd.f32 0.0, %v229
    %v231 = vpop.f32.mrb[0].mxu0
    %232 = vmatprep.mubr.f32.mxu0 0.0
    %233 = vmatmul.mubr.f32.gmra.mrb[0].mxu0 %v76
    %v234 = vpop.f32.mrb[0].mxu0
    %v235 = vadd.f32 0.0, %v234
    %v236 = vpop.f32.mrb[0].mxu0
    %237 = vdwg.mxu0
    %v238 = vld [vmem:[#allocation3] sm:$0x1]
    %v239 = vadd.f32 %v77, %v78
    %v240 = vadd.f32 %v239, %v79
    %v241 = vadd.f32 %v240, %v80
    %v242 = vadd.f32 %v241, %v81
    %v243 = vadd.f32 %v242, %v82
    %v244 = vadd.f32 %v243, %v83
    %v245 = vadd.f32 %v244, %v84
    %v246 = vadd.f32 %v245, %v85
    %v247 = vadd.f32 %v246, %v86
    %v248 = vadd.f32 %v247, %v87
    %v249 = vadd.f32 %v248, %v88
    %v250 = vadd.f32 %v249, %v89
    %v251 = vadd.f32 %v250, %v90
    %v252 = vadd.f32 %v251, %v91
    %v253 = vadd.f32 %v252, %v92
    %v254 = vrot.slane %v253, 4
    %v255 = vadd.f32 %v253, %v254
    %v256 = vrot.slane %v255, 2
    %v257 = vadd.f32 %v255, %v256
    %v258 = vrot.slane %v257, 1
    %v259 = vadd.f32 %v257, %v258
    %v260 = vadd.f32 %v238, %v259
    %261 = vst [vmem:[#allocation3] sm:$0x1] %v260
    %v262 = vld [vmem:[#allocation2] sm:$0xff]
    %v263 = vld [vmem:[#allocation2 + $0x8] sm:$0xff]
    %v264 = vld [vmem:[#allocation2 + $0x10] sm:$0xff]
    %v265 = vld [vmem:[#allocation2 + $0x18] sm:$0xff]
    %v266 = vld [vmem:[#allocation2 + $0x20] sm:$0xff]
    %v267 = vld [vmem:[#allocation2 + $0x28] sm:$0xff]
    %v268 = vld [vmem:[#allocation2 + $0x30] sm:$0xff]
    %v269 = vld [vmem:[#allocation2 + $0x38] sm:$0xff]
    %v270 = vld [vmem:[#allocation2 + $0x40] sm:$0xff]
    %v271 = vld [vmem:[#allocation2 + $0x48] sm:$0xff]
    %v272 = vld [vmem:[#allocation2 + $0x50] sm:$0xff]
    %v273 = vld [vmem:[#allocation2 + $0x58] sm:$0xff]
    %v274 = vld [vmem:[#allocation2 + $0x60] sm:$0xff]
    %v275 = vld [vmem:[#allocation2 + $0x68] sm:$0xff]
    %v276 = vld [vmem:[#allocation2 + $0x70] sm:$0xff]
    %v277 = vld [vmem:[#allocation2 + $0x78] sm:$0xff]
    %278 = vmatprep.subr.mxu0 0.0
    %279 = vmatpush1.msra.mxu0 %v77
    %280 = vmatprep.subr.mxu0 0.0
    %281 = vmatpush1.msra.mxu0 %v78
    %282 = vmatprep.subr.mxu0 0.0
    %283 = vmatpush1.msra.mxu0 %v79
    %284 = vmatprep.subr.mxu0 0.0
    %285 = vmatpush1.msra.mxu0 %v80
    %286 = vmatprep.subr.mxu0 0.0
    %287 = vmatpush1.msra.mxu0 %v81
    %288 = vmatprep.subr.mxu0 0.0
    %289 = vmatpush1.msra.mxu0 %v82
    %290 = vmatprep.subr.mxu0 0.0
    %291 = vmatpush1.msra.mxu0 %v83
    %292 = vmatprep.subr.mxu0 0.0
    %293 = vmatpush1.msra.mxu0 %v84
    %294 = vmatprep.subr.mxu0 0.0
    %295 = vmatpush1.msra.mxu0 %v85
    %296 = vmatprep.subr.mxu0 0.0
    %297 = vmatpush1.msra.mxu0 %v86
    %298 = vmatprep.subr.mxu0 0.0
    %299 = vmatpush1.msra.mxu0 %v87
    %300 = vmatprep.subr.mxu0 0.0
    %301 = vmatpush1.msra.mxu0 %v88
    %302 = vmatprep.subr.mxu0 0.0
    %303 = vmatpush1.msra.mxu0 %v89
    %304 = vmatprep.subr.mxu0 0.0
    %305 = vmatpush1.msra.mxu0 %v90
    %306 = vmatprep.subr.mxu0 0.0
    %307 = vmatpush1.msra.mxu0 %v91
    %308 = vmatprep.subr.mxu0 0.0
    %309 = vmatpush1.msra.mxu0 %v92
    %310 = vmatprep.subr.mxu0 0.0
    %311 = vmatpush1.msra.mxu0 0.0
    %312 = vmatprep.subr.mxu0 0.0
    %313 = vmatpush1.msra.mxu0 0.0
    %314 = vmatprep.subr.mxu0 0.0
    %315 = vmatpush1.msra.mxu0 0.0
    %316 = vmatprep.subr.mxu0 0.0
    %317 = vmatpush1.msra.mxu0 0.0
    %318 = vmatprep.subr.mxu0 0.0
    %319 = vmatpush1.msra.mxu0 0.0
    %320 = vmatprep.subr.mxu0 0.0
    %321 = vmatpush1.msra.mxu0 0.0
    %322 = vmatprep.subr.mxu0 0.0
    %323 = vmatpush1.msra.mxu0 0.0
    %324 = vmatprep.subr.mxu0 0.0
    %325 = vmatpush1.msra.mxu0 0.0
    %326 = vmatprep.subr.mxu0 0.0
    %327 = vmatpush1.msra.mxu0 0.0
    %328 = vmatprep.subr.mxu0 0.0
    %329 = vmatpush1.msra.mxu0 0.0
    %330 = vmatprep.subr.mxu0 0.0
    %331 = vmatpush1.msra.mxu0 0.0
    %332 = vmatprep.subr.mxu0 0.0
    %333 = vmatpush1.msra.mxu0 0.0
    %334 = vmatprep.subr.mxu0 0.0
    %335 = vmatpush1.msra.mxu0 0.0
    %336 = vmatprep.subr.mxu0 0.0
    %337 = vmatpush1.msra.mxu0 0.0
    %338 = vmatprep.subr.mxu0 0.0
    %339 = vmatpush1.msra.mxu0 0.0
    %340 = vmatprep.subr.mxu0 0.0
    %341 = vmatpush1.msra.mxu0 0.0
    %342 = vmatprep.mubr.f32.mxu0 0.0
    %343 = vmatmul.mubr.f32.gmra.mrb[0].mxu0 %v160
    %v344 = vpop.f32.mrb[0].mxu0
    %v345 = vadd.f32 0.0, %v344
    %v346 = vpop.f32.mrb[0].mxu0
    %347 = vmatprep.mubr.f32.mxu0 0.0
    %348 = vmatmul.mubr.f32.gmra.mrb[0].mxu0 %v165
    %v349 = vpop.f32.mrb[0].mxu0
    %v350 = vadd.f32 0.0, %v349
    %v351 = vpop.f32.mrb[0].mxu0
    %352 = vmatprep.mubr.f32.mxu0 0.0
    %353 = vmatmul.mubr.f32.gmra.mrb[0].mxu0 %v170
    %v354 = vpop.f32.mrb[0].mxu0
    %v355 = vadd.f32 0.0, %v354
    %v356 = vpop.f32.mrb[0].mxu0
    %357 = vmatprep.mubr.f32.mxu0 0.0
    %358 = vmatmul.mubr.f32.gmra.mrb[0].mxu0 %v175
    %v359 = vpop.f32.mrb[0].mxu0
    %v360 = vadd.f32 0.0, %v359
    %v361 = vpop.f32.mrb[0].mxu0
    %362 = vmatprep.mubr.f32.mxu0 0.0
    %363 = vmatmul.mubr.f32.gmra.mrb[0].mxu0 %v180
    %v364 = vpop.f32.mrb[0].mxu0
    %v365 = vadd.f32 0.0, %v364
    %v366 = vpop.f32.mrb[0].mxu0
    %367 = vmatprep.mubr.f32.mxu0 0.0
    %368 = vmatmul.mubr.f32.gmra.mrb[0].mxu0 %v185
    %v369 = vpop.f32.mrb[0].mxu0
    %v370 = vadd.f32 0.0, %v369
    %v371 = vpop.f32.mrb[0].mxu0
    %372 = vmatprep.mubr.f32.mxu0 0.0
    %373 = vmatmul.mubr.f32.gmra.mrb[0].mxu0 %v190
    %v374 = vpop.f32.mrb[0].mxu0
    %v375 = vadd.f32 0.0, %v374
    %v376 = vpop.f32.mrb[0].mxu0
    %377 = vmatprep.mubr.f32.mxu0 0.0
    %378 = vmatmul.mubr.f32.gmra.mrb[0].mxu0 %v195
    %v379 = vpop.f32.mrb[0].mxu0
    %v380 = vadd.f32 0.0, %v379
    %v381 = vpop.f32.mrb[0].mxu0
    %382 = vmatprep.mubr.f32.mxu0 0.0
    %383 = vmatmul.mubr.f32.gmra.mrb[0].mxu0 %v200
    %v384 = vpop.f32.mrb[0].mxu0
    %v385 = vadd.f32 0.0, %v384
    %v386 = vpop.f32.mrb[0].mxu0
    %387 = vmatprep.mubr.f32.mxu0 0.0
    %388 = vmatmul.mubr.f32.gmra.mrb[0].mxu0 %v205
    %v389 = vpop.f32.mrb[0].mxu0
    %v390 = vadd.f32 0.0, %v389
    %v391 = vpop.f32.mrb[0].mxu0
    %392 = vmatprep.mubr.f32.mxu0 0.0
    %393 = vmatmul.mubr.f32.gmra.mrb[0].mxu0 %v210
    %v394 = vpop.f32.mrb[0].mxu0
    %v395 = vadd.f32 0.0, %v394
    %v396 = vpop.f32.mrb[0].mxu0
    %397 = vmatprep.mubr.f32.mxu0 0.0
    %398 = vmatmul.mubr.f32.gmra.mrb[0].mxu0 %v215
    %v399 = vpop.f32.mrb[0].mxu0
    %v400 = vadd.f32 0.0, %v399
    %v401 = vpop.f32.mrb[0].mxu0
    %402 = vmatprep.mubr.f32.mxu0 0.0
    %403 = vmatmul.mubr.f32.gmra.mrb[0].mxu0 %v220
    %v404 = vpop.f32.mrb[0].mxu0
    %v405 = vadd.f32 0.0, %v404
    %v406 = vpop.f32.mrb[0].mxu0
    %407 = vmatprep.mubr.f32.mxu0 0.0
    %408 = vmatmul.mubr.f32.gmra.mrb[0].mxu0 %v225
    %v409 = vpop.f32.mrb[0].mxu0
    %v410 = vadd.f32 0.0, %v409
    %v411 = vpop.f32.mrb[0].mxu0
    %412 = vmatprep.mubr.f32.mxu0 0.0
    %413 = vmatmul.mubr.f32.gmra.mrb[0].mxu0 %v230
    %v414 = vpop.f32.mrb[0].mxu0
    %v415 = vadd.f32 0.0, %v414
    %v416 = vpop.f32.mrb[0].mxu0
    %417 = vmatprep.mubr.f32.mxu0 0.0
    %418 = vmatmul.mubr.f32.gmra.mrb[0].mxu0 %v235
    %v419 = vpop.f32.mrb[0].mxu0
    %v420 = vadd.f32 0.0, %v419
    %v421 = vpop.f32.mrb[0].mxu0
    %422 = vdwg.mxu0
    %v423 = vadd.f32 %v262, %v345
    %v424 = vadd.f32 %v263, %v350
    %v425 = vadd.f32 %v264, %v355
    %v426 = vadd.f32 %v265, %v360
    %v427 = vadd.f32 %v266, %v365
    %v428 = vadd.f32 %v267, %v370
    %v429 = vadd.f32 %v268, %v375
    %v430 = vadd.f32 %v269, %v380
    %v431 = vadd.f32 %v270, %v385
    %v432 = vadd.f32 %v271, %v390
    %v433 = vadd.f32 %v272, %v395
    %v434 = vadd.f32 %v273, %v400
    %v435 = vadd.f32 %v274, %v405
    %v436 = vadd.f32 %v275, %v410
    %v437 = vadd.f32 %v276, %v415
    %v438 = vadd.f32 %v277, %v420
    %439 = vst [vmem:[#allocation2] sm:$0xff] %v423
    %440 = vst [vmem:[#allocation2 + $0x8] sm:$0xff] %v424
    %441 = vst [vmem:[#allocation2 + $0x10] sm:$0xff] %v425
    %442 = vst [vmem:[#allocation2 + $0x18] sm:$0xff] %v426
    %443 = vst [vmem:[#allocation2 + $0x20] sm:$0xff] %v427
    %444 = vst [vmem:[#allocation2 + $0x28] sm:$0xff] %v428
    %445 = vst [vmem:[#allocation2 + $0x30] sm:$0xff] %v429
    %446 = vst [vmem:[#allocation2 + $0x38] sm:$0xff] %v430
    %447 = vst [vmem:[#allocation2 + $0x40] sm:$0xff] %v431
    %448 = vst [vmem:[#allocation2 + $0x48] sm:$0xff] %v432
    %449 = vst [vmem:[#allocation2 + $0x50] sm:$0xff] %v433
    %450 = vst [vmem:[#allocation2 + $0x58] sm:$0xff] %v434
    %451 = vst [vmem:[#allocation2 + $0x60] sm:$0xff] %v435
    %452 = vst [vmem:[#allocation2 + $0x68] sm:$0xff] %v436
    %453 = vst [vmem:[#allocation2 + $0x70] sm:$0xff] %v437
    %454 = vst [vmem:[#allocation2 + $0x78] sm:$0xff] %v438
    // Predicated region
    $region22: #{tpu_custom_call.1} parent=1 // pred_check
      %p455 = pneg %p40
    $region23: #{tpu_custom_call.1} parent=1 // pred_check_branch
      %457 = sbr.rel (%p455) target = $region25
    $region24: #{tpu_custom_call.1} parent=1 // pred_region
      %v458 = vld [vmem:[#allocation3] sm:$0x1]
      %v460 = vlaneseq
      %v461 = vshrl.u32 %v460, 7
      %v462 = vsub.s32 0, %v461
      %v463 = vrot.slane %v458, %v462
      %v465 = vmul.f32 %v61, %v463
      %v466 = vmul.f32 %v62, %v463
      %v467 = vmul.f32 %v63, %v463
      %v468 = vmul.f32 %v64, %v463
      %v469 = vmul.f32 %v65, %v463
      %v470 = vmul.f32 %v66, %v463
      %v471 = vmul.f32 %v67, %v463
      %v472 = vmul.f32 %v68, %v463
      %v473 = vmul.f32 %v69, %v463
      %v474 = vmul.f32 %v70, %v463
      %v475 = vmul.f32 %v71, %v463
      %v476 = vmul.f32 %v72, %v463
      %v477 = vmul.f32 %v73, %v463
      %v478 = vmul.f32 %v74, %v463
      %v479 = vmul.f32 %v75, %v463
      %v480 = vmul.f32 %v76, %v463
      %481 = vadd.xlane.f32.xlu0 %v465
      %v482 = vpop.xlane.xlu0 %481
      %483 = vadd.xlane.f32.xlu0 %v466
      %v484 = vpop.xlane.xlu0 %483
      %485 = vadd.xlane.f32.xlu0 %v467
      %v486 = vpop.xlane.xlu0 %485
      %487 = vadd.xlane.f32.xlu0 %v468
      %v488 = vpop.xlane.xlu0 %487
      %489 = vadd.xlane.f32.xlu0 %v469
      %v490 = vpop.xlane.xlu0 %489
      %491 = vadd.xlane.f32.xlu0 %v470
      %v492 = vpop.xlane.xlu0 %491
      %493 = vadd.xlane.f32.xlu0 %v471
      %v494 = vpop.xlane.xlu0 %493
      %495 = vadd.xlane.f32.xlu0 %v472
      %v496 = vpop.xlane.xlu0 %495
      %497 = vadd.xlane.f32.xlu0 %v473
      %v498 = vpop.xlane.xlu0 %497
      %499 = vadd.xlane.f32.xlu0 %v474
      %v500 = vpop.xlane.xlu0 %499
      %501 = vadd.xlane.f32.xlu0 %v475
      %v502 = vpop.xlane.xlu0 %501
      %503 = vadd.xlane.f32.xlu0 %v476
      %v504 = vpop.xlane.xlu0 %503
      %505 = vadd.xlane.f32.xlu0 %v477
      %v506 = vpop.xlane.xlu0 %505
      %507 = vadd.xlane.f32.xlu0 %v478
      %v508 = vpop.xlane.xlu0 %507
      %509 = vadd.xlane.f32.xlu0 %v479
      %v510 = vpop.xlane.xlu0 %509
      %511 = vadd.xlane.f32.xlu0 %v480
      %v512 = vpop.xlane.xlu0 %511
      %vm513 = vcmp.eq.f32.partialorder %v482, 0.0
      %vm514 = vcmp.eq.f32.partialorder %v484, 0.0
      %vm515 = vcmp.eq.f32.partialorder %v486, 0.0
      %vm516 = vcmp.eq.f32.partialorder %v488, 0.0
      %vm517 = vcmp.eq.f32.partialorder %v490, 0.0
      %vm518 = vcmp.eq.f32.partialorder %v492, 0.0
      %vm519 = vcmp.eq.f32.partialorder %v494, 0.0
      %vm520 = vcmp.eq.f32.partialorder %v496, 0.0
      %vm521 = vcmp.eq.f32.partialorder %v498, 0.0
      %vm522 = vcmp.eq.f32.partialorder %v500, 0.0
      %vm523 = vcmp.eq.f32.partialorder %v502, 0.0
      %vm524 = vcmp.eq.f32.partialorder %v504, 0.0
      %vm525 = vcmp.eq.f32.partialorder %v506, 0.0
      %vm526 = vcmp.eq.f32.partialorder %v508, 0.0
      %vm527 = vcmp.eq.f32.partialorder %v510, 0.0
      %vm528 = vcmp.eq.f32.partialorder %v512, 0.0
      %v529 = vsel %vm513, 1.0, %v482
      %v530 = vsel %vm514, 1.0, %v484
      %v531 = vsel %vm515, 1.0, %v486
      %v532 = vsel %vm516, 1.0, %v488
      %v533 = vsel %vm517, 1.0, %v490
      %v534 = vsel %vm518, 1.0, %v492
      %v535 = vsel %vm519, 1.0, %v494
      %v536 = vsel %vm520, 1.0, %v496
      %v537 = vsel %vm521, 1.0, %v498
      %v538 = vsel %vm522, 1.0, %v500
      %v539 = vsel %vm523, 1.0, %v502
      %v540 = vsel %vm524, 1.0, %v504
      %v541 = vsel %vm525, 1.0, %v506
      %v542 = vsel %vm526, 1.0, %v508
      %v543 = vsel %vm527, 1.0, %v510
      %v544 = vsel %vm528, 1.0, %v512
      %v545 = vld [vmem:[#allocation2] sm:$0xff]
      %v546 = vld [vmem:[#allocation2 + $0x8] sm:$0xff]
      %v547 = vld [vmem:[#allocation2 + $0x10] sm:$0xff]
      %v548 = vld [vmem:[#allocation2 + $0x18] sm:$0xff]
      %v549 = vld [vmem:[#allocation2 + $0x20] sm:$0xff]
      %v550 = vld [vmem:[#allocation2 + $0x28] sm:$0xff]
      %v551 = vld [vmem:[#allocation2 + $0x30] sm:$0xff]
      %v552 = vld [vmem:[#allocation2 + $0x38] sm:$0xff]
      %v553 = vld [vmem:[#allocation2 + $0x40] sm:$0xff]
      %v554 = vld [vmem:[#allocation2 + $0x48] sm:$0xff]
      %v555 = vld [vmem:[#allocation2 + $0x50] sm:$0xff]
      %v556 = vld [vmem:[#allocation2 + $0x58] sm:$0xff]
      %v557 = vld [vmem:[#allocation2 + $0x60] sm:$0xff]
      %v558 = vld [vmem:[#allocation2 + $0x68] sm:$0xff]
      %v559 = vld [vmem:[#allocation2 + $0x70] sm:$0xff]
      %v560 = vld [vmem:[#allocation2 + $0x78] sm:$0xff]
      %v561 = vrcp.pop %v529
      %v562 = vrcp.pop %v530
      %v563 = vrcp.pop %v531
      %v564 = vrcp.pop %v532
      %v565 = vrcp.pop %v533
      %v566 = vrcp.pop %v534
      %v567 = vrcp.pop %v535
      %v568 = vrcp.pop %v536
      %v569 = vrcp.pop %v537
      %v570 = vrcp.pop %v538
      %v571 = vrcp.pop %v539
      %v572 = vrcp.pop %v540
      %v573 = vrcp.pop %v541
      %v574 = vrcp.pop %v542
      %v575 = vrcp.pop %v543
      %v576 = vrcp.pop %v544
      %v577 = vmul.f32 %v545, %v561
      %v578 = vmul.f32 %v546, %v562
      %v579 = vmul.f32 %v547, %v563
      %v580 = vmul.f32 %v548, %v564
      %v581 = vmul.f32 %v549, %v565
      %v582 = vmul.f32 %v550, %v566
      %v583 = vmul.f32 %v551, %v567
      %v584 = vmul.f32 %v552, %v568
      %v585 = vmul.f32 %v553, %v569
      %v586 = vmul.f32 %v554, %v570
      %v587 = vmul.f32 %v555, %v571
      %v588 = vmul.f32 %v556, %v572
      %v589 = vmul.f32 %v557, %v573
      %v590 = vmul.f32 %v558, %v574
      %v591 = vmul.f32 %v559, %v575
      %v592 = vmul.f32 %v560, %v576
      %593 = vst [vmem:[#allocation9] sm:$0xff] %v577
      %594 = vst [vmem:[#allocation9 + $0x8] sm:$0xff] %v578
      %595 = vst [vmem:[#allocation9 + $0x10] sm:$0xff] %v579
      %596 = vst [vmem:[#allocation9 + $0x18] sm:$0xff] %v580
      %597 = vst [vmem:[#allocation9 + $0x20] sm:$0xff] %v581
      %598 = vst [vmem:[#allocation9 + $0x28] sm:$0xff] %v582
      %599 = vst [vmem:[#allocation9 + $0x30] sm:$0xff] %v583
      %600 = vst [vmem:[#allocation9 + $0x38] sm:$0xff] %v584
      %601 = vst [vmem:[#allocation9 + $0x40] sm:$0xff] %v585
      %602 = vst [vmem:[#allocation9 + $0x48] sm:$0xff] %v586
      %603 = vst [vmem:[#allocation9 + $0x50] sm:$0xff] %v587
      %604 = vst [vmem:[#allocation9 + $0x58] sm:$0xff] %v588
      %605 = vst [vmem:[#allocation9 + $0x60] sm:$0xff] %v589
      %606 = vst [vmem:[#allocation9 + $0x68] sm:$0xff] %v590
      %607 = vst [vmem:[#allocation9 + $0x70] sm:$0xff] %v591
      %608 = vst [vmem:[#allocation9 + $0x78] sm:$0xff] %v592
    $region25: #{tpu_custom_call.1} parent=1 // pred_fallthru
      _
    // Predicated region
    $region26: #{tpu_custom_call.1} parent=1 // pred_check
      _
    $region27: #{tpu_custom_call.1} parent=1 // pred_check_branch
      %610 = sbr.rel (0) target = $region29
    $region28: #{tpu_custom_call.1} parent=1 // pred_region
      %s612 = ssub.s32 2048, 2048
      %613 = vsyncadd [#allocation6], %s612
      %s614 = sshll.u32 [#allocation9], 4
      %s615 = int_to_ptr.vmem [resolvable:$true] %s614
      %620 = dma.vmem_to_hbm [thread:$0]  %s615, 2048, %s2, [#allocation6], 128, 128, 8
    $region29: #{tpu_custom_call.1} parent=1 // pred_fallthru
      _
    // Predicated region
    $region30: #{tpu_custom_call.1} parent=1 // pred_check
      _
    $region31: #{tpu_custom_call.1} parent=1 // pred_check_branch
      %622 = sbr.rel (0) target = $region33
    $region32: #{tpu_custom_call.1} parent=1 // pred_region
      %623 = dma.done [#allocation6], 2048
    $region33: #{tpu_custom_call.1} parent=1 // pred_fallthru
      _
    %624 = vsyncpa [#allocation5], 1
    %625 = vsyncpa [#allocation8], 1
    %626 = vsyncpa [#allocation6], 1

</llo_original>
